<compile_context>
chip_gen: v7x
topology: tpu7x:2x2x1
jax: 0.10.0
libtpu: 0.0.40
codegen_flags: <defaults>
</compile_context>

<pallas_src>
import functools

import jax
import jax.numpy as jnp
from jax.experimental import pallas as pl
from jax.experimental.pallas import tpu as pltpu


def _sum_attention_dot_kernel(x_ref, wrc_ref, brc_ref, wout_ref, bout_ref, o_ref,
                              *, n, a, tile_b):
    # x_ref:    (TILE_B*N, A)          batch-stacked input rows (row = b*N + v)
    # wrc_ref:  (TILE_B*A, TILE_B*N)   block-diagonal fused weight  W_r @ W_c
    # brc_ref:  (TILE_B*A, 1)          fused bias  W_r @ b_c, tiled per batch
    # wout_ref: (A, D)                 outlayer weight, pre-transposed
    # bout_ref: (1, D)                 outlayer bias
    # o_ref:    (TILE_B*N, D)          batch-stacked output rows (row = b*N + v)
    x = x_ref[...].astype(jnp.float32)                                        # (TB*N, A)

    # Fused att_channel + relation: one MXU call for the whole batch tile.
    x_r = jnp.dot(wrc_ref[...], x,
                  preferred_element_type=jnp.float32) + brc_ref[...]          # (TB*A, A)

    # Whole-block row-wise softmax (exact per-batch max; single exp / reciprocal pass).
    m = jnp.max(x_r, axis=-1, keepdims=True)
    e = jnp.exp(x_r - m)
    att = e * pl.reciprocal(jnp.sum(e, axis=-1, keepdims=True), approx=True)  # (TB*A, A)

    # Per-batch y_b = x_b @ att_b.  Only the batched matmul remains in this (short, static)
    # loop; both slices are sublane-aligned (multiples of 8) so they are plain vreg picks.
    ys = []
    for b in range(tile_b):
        xb = x[b * n:(b + 1) * n, :]                                          # (N, A)
        ab = att[b * a:(b + 1) * a, :]                                        # (A, A)
        ys.append(jnp.dot(xb, ab, preferred_element_type=jnp.float32))
    y = jnp.maximum(jnp.concatenate(ys, axis=0), 0.0)                         # (TB*N, A)

    # Single tail GEMM: M = TILE_B*N fills the MXU rows; bias broadcast over rows.
    out = jnp.dot(y, wout_ref[...],
                  preferred_element_type=jnp.float32) + bout_ref[...]         # (TB*N, D)
    o_ref[...] = out.astype(o_ref.dtype)


def sum_attention_dot(x_bmt, wc, bc, wr, wout, bout, *, tile_b=None, io_dtype=None):
    """x_bmt: (B, N, A).  Returns (B, N, D)."""
    B, N, A = x_bmt.shape
    D = wout.shape[0]
    if io_dtype is None:
        io_dtype = x_bmt.dtype     # pass jnp.bfloat16 on v5e/v6e to halve HBM streaming

    if tile_b is None:
        # Amortize the ~0.35us/grid-step overhead while (a) keeping the unrolled per-batch
        # matmul loop short, (b) keeping the tile_b^2-sized block-diag W_rc small
        # (tile_b=32 -> 2 MiB f32), and (c) leaving >= 2 grid steps for v7x's 2 TensorCores.
        tile_b = max(1, min(32, B // 2))

    pb = pl.cdiv(B, tile_b) * tile_b
    x_p = x_bmt if pb == B else jnp.pad(x_bmt, ((0, pb - B), (0, 0), (0, 0)))
    # (PB, N, A) -> (PB*N, A) is a row-major collapse: free, no HBM transpose.
    x_flat = x_p.reshape(pb * N, A).astype(io_dtype)

    # Fuse the two 1x1 convs:  x_r = (W_r @ W_c) x + (W_r @ b_c).
    w_rc = wr @ wc                                                   # (A, N)
    b_rc = wr @ bc                                                   # (A,)
    w_rc_bd = jnp.kron(jnp.eye(tile_b, dtype=w_rc.dtype), w_rc)      # (TB*A, TB*N) block-diag
    b_rc_t = jnp.tile(b_rc, tile_b).reshape(tile_b * A, 1)           # (TB*A, 1)
    wout_t = wout.T                                                  # (A, D)
    bout2 = bout.reshape(1, D)                                       # (1, D)

    kern = functools.partial(_sum_attention_dot_kernel, n=N, a=A, tile_b=tile_b)
    resident = dict(pipeline_mode=pl.Buffered(1))   # constants: no second pipeline buffer

    out_flat = pl.pallas_call(
        kern,
        out_shape=jax.ShapeDtypeStruct((pb * N, D), io_dtype),
        grid_spec=pltpu.PrefetchScalarGridSpec(
            num_scalar_prefetch=0,
            grid=(pb // tile_b,),
            in_specs=[
                pl.BlockSpec((tile_b * N, A), lambda g: (g, 0)),              # x (streamed)
                pl.BlockSpec((tile_b * A, tile_b * N), lambda g: (0, 0), **resident),
                pl.BlockSpec((tile_b * A, 1), lambda g: (0, 0), **resident),
                pl.BlockSpec((A, D), lambda g: (0, 0), **resident),
                pl.BlockSpec((1, D), lambda g: (0, 0), **resident),
            ],
            out_specs=pl.BlockSpec((tile_b * N, D), lambda g: (g, 0)),
        ),
        compiler_params=pltpu.CompilerParams(
            dimension_semantics=("parallel",),
            vmem_limit_bytes=32 * 1024 * 1024),
    )(x_flat, w_rc_bd, b_rc_t, wout_t, bout2)

    # (PB*N, D) -> (PB, N, D) is again a free row-major reshape; drop batch padding.
    return out_flat.reshape(pb, N, D)[:B]


def reference(x_bmt, wc, bc, wr, wout, bout):
    """Pure-JAX reference mirroring the PyTorch forward (eval mode)."""
    x_c = jnp.einsum('cn,bnl->bcl', wc, x_bmt) + bc[None, :, None]
    x_r = jnp.einsum('oc,bcl->bol', wr, x_c)
    a = jax.nn.softmax(x_r, axis=-1)
    y = jnp.maximum(jnp.einsum('bna,bal->bnl', x_bmt, a), 0.0)
    return jnp.einsum('bna,da->bnd', y, wout) + bout[None, None, :]


if __name__ == "__main__":
    # Module hyper-params
    dim_out = 8
    num_view = 4
    num_of_vertices = 16
    att_dim = dim_out * num_view          # 32
    B = 2

    key = jax.random.PRNGKey(0)
    k_views, k_wc, k_bc, k_wr, k_wout, k_bout = jax.random.split(key, 6)

    # List of `num_view` view tensors, each (B, num_of_vertices, dim_out)
    view_keys = jax.random.split(k_views, num_view)
    bmt = [jax.random.normal(vk, (B, num_of_vertices, dim_out), jnp.float32)
           for vk in view_keys]
    x_bmt = jnp.concatenate(bmt, axis=-1)             # (B, N, att_dim)

    # Deterministic parameter init (shapes follow nn module __init__)
    wc = jax.random.normal(k_wc, (att_dim, num_of_vertices), jnp.float32) * 0.1  # att_channel.weight
    bc = jax.random.normal(k_bc, (att_dim,), jnp.float32) * 0.1                  # att_channel.bias
    wr = jax.random.normal(k_wr, (att_dim, att_dim), jnp.float32) * 0.1          # relation.weight
    wout = jax.random.normal(k_wout, (dim_out, att_dim), jnp.float32) * 0.1      # outlayer.weight
    bout = jax.random.normal(k_bout, (dim_out,), jnp.float32) * 0.1              # outlayer.bias

    ref = reference(x_bmt, wc, bc, wr, wout, bout)

    # Default path: tile_b=1 at B=2 -> grid=(2,), no padding.
    out = sum_attention_dot(x_bmt, wc, bc, wr, wout, bout)
    out = jax.block_until_ready(out)
    assert out.shape == (B, num_of_vertices, dim_out)
    # Tolerance slightly relaxed vs. exact divide: fused (wr@wc) rounding + EUP approximate
    # reciprocal in the softmax denominator (relative error ~2^-12).
    assert jnp.allclose(out, ref, atol=2e-3, rtol=2e-3), "mismatch vs reference (tile_b=1)"

    # Batched-tile path: tile_b=4 exercises the block-diagonal fused weight, the multi-batch
    # unrolled loop, and batch padding (pb=4 > B=2; padded rows are computed and sliced off).
    out4 = jax.block_until_ready(
        sum_attention_dot(x_bmt, wc, bc, wr, wout, bout, tile_b=4))
    assert out4.shape == (B, num_of_vertices, dim_out)
    assert jnp.allclose(out4, ref, atol=2e-3, rtol=2e-3), "mismatch vs reference (tile_b=4)"

    print("KERNEL_OK")
</pallas_src>

<mosaic_0001>
module attributes {stable_mosaic.version = 11 : i64} {
  func.func @_sum_attention_dot_kernel(%arg0: i32, %arg1: memref<16x32xf32, #tpu.memory_space<vmem>>, %arg2: memref<32x16xf32, #tpu.memory_space<vmem>>, %arg3: memref<32x1xf32, #tpu.memory_space<vmem>>, %arg4: memref<32x8xf32, #tpu.memory_space<vmem>>, %arg5: memref<1x8xf32, #tpu.memory_space<vmem>>, %arg6: memref<16x8xf32, #tpu.memory_space<vmem>>) attributes {dimension_semantics = [#tpu.dimension_semantics<parallel>], iteration_bounds = array<i64: 2>, scalar_prefetch = 0 : i64, scratch_operands = 0 : i64, tpu.core_type = #tpu.core_type<tc>, window_params = [{transform_indices = @transform_0, window_bounds = array<i64: 16, 32>}, {pipeline_mode = #tpu.pipeline_mode<synchronous>, transform_indices = @transform_1, window_bounds = array<i64: 32, 16>}, {pipeline_mode = #tpu.pipeline_mode<synchronous>, transform_indices = @transform_2, window_bounds = array<i64: 32, 1>}, {pipeline_mode = #tpu.pipeline_mode<synchronous>, transform_indices = @transform_3, window_bounds = array<i64: 32, 8>}, {pipeline_mode = #tpu.pipeline_mode<synchronous>, transform_indices = @transform_4, window_bounds = array<i64: 1, 8>}, {transform_indices = @transform_5, window_bounds = array<i64: 16, 8>}]} {
    %c0 = arith.constant 0 : index
    %c0_0 = arith.constant 0 : index
    %0 = vector.load %arg1[%c0, %c0_0] : memref<16x32xf32, #tpu.memory_space<vmem>>, vector<16x32xf32>
    %c0_1 = arith.constant 0 : index
    %c0_2 = arith.constant 0 : index
    %1 = vector.load %arg2[%c0_1, %c0_2] : memref<32x16xf32, #tpu.memory_space<vmem>>, vector<32x16xf32>
    %cst = arith.constant dense<0.000000e+00> : vector<32x32xf32>
    %2 = tpu.matmul %1, %0, %cst {dimension_numbers = #tpu.dot_dimension_numbers<[1], [0], [0], [1], [0, 0, 1, 1], [], []>} : vector<32x16xf32>, vector<16x32xf32>, vector<32x32xf32> -> vector<32x32xf32>
    %c0_3 = arith.constant 0 : index
    %c0_4 = arith.constant 0 : index
    %3 = vector.load %arg3[%c0_3, %c0_4] : memref<32x1xf32, #tpu.memory_space<vmem>>, vector<32x1xf32>
    %4 = vector.broadcast %3 : vector<32x1xf32> to vector<32x32xf32>
    %5 = arith.addf %2, %4 : vector<32x32xf32>
    %cst_5 = arith.constant dense<0xFF800000> : vector<32xf32>
    %6 = vector.multi_reduction <maximumf>, %5, %cst_5 [1] : vector<32x32xf32> to vector<32xf32>
    %7 = vector.shape_cast %6 : vector<32xf32> to vector<32x1xf32>
    %8 = vector.broadcast %7 : vector<32x1xf32> to vector<32x32xf32>
    %9 = arith.subf %5, %8 : vector<32x32xf32>
    %10 = math.exp %9 : vector<32x32xf32>
    %cst_6 = arith.constant dense<0.000000e+00> : vector<32xf32>
    %11 = vector.multi_reduction <add>, %10, %cst_6 [1] : vector<32x32xf32> to vector<32xf32>
    %12 = vector.shape_cast %11 : vector<32xf32> to vector<32x1xf32>
    %13 = tpu.reciprocal %12 {approx = true} : vector<32x1xf32> -> vector<32x1xf32>
    %14 = vector.broadcast %13 : vector<32x1xf32> to vector<32x32xf32>
    %15 = arith.mulf %10, %14 : vector<32x32xf32>
    %cst_7 = arith.constant dense<0.000000e+00> : vector<16x32xf32>
    %16 = tpu.matmul %0, %15, %cst_7 {dimension_numbers = #tpu.dot_dimension_numbers<[1], [0], [0], [1], [0, 0, 1, 1], [], []>} : vector<16x32xf32>, vector<32x32xf32>, vector<16x32xf32> -> vector<16x32xf32>
    %cst_8 = arith.constant 0.000000e+00 : f32
    %17 = vector.broadcast %cst_8 : f32 to vector<16x32xf32>
    %18 = arith.maximumf %16, %17 : vector<16x32xf32>
    %c0_9 = arith.constant 0 : index
    %c0_10 = arith.constant 0 : index
    %19 = vector.load %arg4[%c0_9, %c0_10] : memref<32x8xf32, #tpu.memory_space<vmem>>, vector<32x8xf32>
    %cst_11 = arith.constant dense<0.000000e+00> : vector<16x8xf32>
    %20 = tpu.matmul %18, %19, %cst_11 {dimension_numbers = #tpu.dot_dimension_numbers<[1], [0], [0], [1], [0, 0, 1, 1], [], []>} : vector<16x32xf32>, vector<32x8xf32>, vector<16x8xf32> -> vector<16x8xf32>
    %c0_12 = arith.constant 0 : index
    %c0_13 = arith.constant 0 : index
    %21 = vector.load %arg5[%c0_12, %c0_13] : memref<1x8xf32, #tpu.memory_space<vmem>>, vector<1x8xf32>
    %22 = vector.broadcast %21 : vector<1x8xf32> to vector<16x8xf32>
    %23 = arith.addf %20, %22 : vector<16x8xf32>
    %c0_14 = arith.constant 0 : index
    %c0_15 = arith.constant 0 : index
    %24 = vector.load %arg6[%c0_14, %c0_15] : memref<16x8xf32, #tpu.memory_space<vmem>>, vector<16x8xf32>
    tpu.vector_store %arg6[%c0_14, %c0_15], %23 {strides = array<i32>} : memref<16x8xf32, #tpu.memory_space<vmem>>, vector<16x8xf32>,
    return
  }
  func.func @transform_0(%arg0: i32) -> (i32, i32) {
    %c0_i32 = arith.constant 0 : i32
    %c0_i32_0 = arith.constant 0 : i32
    return %arg0, %c0_i32 : i32, i32
  }
  func.func @transform_1(%arg0: i32) -> (i32, i32) {
    %c0_i32 = arith.constant 0 : i32
    %c0_i32_0 = arith.constant 0 : i32
    %c0_i32_1 = arith.constant 0 : i32
    return %c0_i32, %c0_i32_0 : i32, i32
  }
  func.func @transform_2(%arg0: i32) -> (i32, i32) {
    %c0_i32 = arith.constant 0 : i32
    %c0_i32_0 = arith.constant 0 : i32
    %c0_i32_1 = arith.constant 0 : i32
    return %c0_i32, %c0_i32_0 : i32, i32
  }
  func.func @transform_3(%arg0: i32) -> (i32, i32) {
    %c0_i32 = arith.constant 0 : i32
    %c0_i32_0 = arith.constant 0 : i32
    %c0_i32_1 = arith.constant 0 : i32
    return %c0_i32, %c0_i32_0 : i32, i32
  }
  func.func @transform_4(%arg0: i32) -> (i32, i32) {
    %c0_i32 = arith.constant 0 : i32
    %c0_i32_0 = arith.constant 0 : i32
    %c0_i32_1 = arith.constant 0 : i32
    return %c0_i32, %c0_i32_0 : i32, i32
  }
  func.func @transform_5(%arg0: i32) -> (i32, i32) {
    %c0_i32 = arith.constant 0 : i32
    %c0_i32_0 = arith.constant 0 : i32
    return %arg0, %c0_i32 : i32, i32
  }
}

</mosaic_0001>

<llo_original>
// kernel: tpu_custom_call.1
$region0: #{tpu_custom_call.1}
  #allocation0 [shape = 'u32[]', space=smem, size = 0x4, offset = 0x4, fixed_abs, tag = 'smem constant byte address 0x4 - core index']
  #allocation1 [shape = 'u32[144,128]{1,0:T(1,128)}', space=vmem, size = 0x12000, scoped, tag = 'internal scratch']
  %s0 = inlined_call_operand.vmem [shape: f32[32,32], index: 0, kind: input, shape index: {}]
  %s1 = inlined_call_operand.vmem [shape: f32[32,16], index: 1, kind: input, shape index: {}]
  %s2 = inlined_call_operand.vmem [shape: f32[32,1], index: 2, kind: input, shape index: {}]
  %s3 = inlined_call_operand.vmem [shape: f32[32,8], index: 3, kind: input, shape index: {}]
  %s4 = inlined_call_operand.vmem [shape: f32[1,8], index: 4, kind: input, shape index: {}]
  %s5 = inlined_call_operand.vmem [shape: f32[32,8], index: 5, kind: output, shape index: {}]
  %s6 = sld [smem:[#allocation0]]
  $region53: #{tpu_custom_call.1} parent=0
    _
  %s8 = ssub.s32 1, %s6
  %s9 = scalar_select 0, %s8, %s6
  loop: start=0, step=1, limit=4
  $region2: #{tpu_custom_call.1} parent=0 // loop_pre_header
    _
  $region3: #{tpu_custom_call.1} parent=0 // loop_header
    %s11 = sphi 0, %s15
    %p12 = scmp.ge.s32.totalorder %s11, 4
    %s21 = sphi 0, %s23
    %s24 = sphi 0, %s21
    %s25 = sphi 0, %s24
    %s41 = sphi 0, %s25
    %s45 = sphi 0, %s45
    %s47 = sphi 0, %s45
    %s48 = sphi 0, %s47
    %s62 = sphi 0, %s48
    %s66 = sphi 0, %s66
    %s68 = sphi 0, %s66
    %s69 = sphi 0, %s68
    %s83 = sphi 0, %s69
    %s87 = sphi 0, %s87
    %s89 = sphi 0, %s87
    %s90 = sphi 0, %s89
    %s104 = sphi 0, %s90
    %s108 = sphi 0, %s108
    %s110 = sphi 0, %s108
    %s111 = sphi 0, %s110
    %s125 = sphi 0, %s111
    %s131 = sphi 0, %s133
    %s134 = sphi 0, %s131
    %s135 = sphi 0, %s134
    %s151 = sphi 0, %s135
  $region4: #{tpu_custom_call.1} parent=0 // loop_header_branch
    %14 = sbr.rel (%p12) target = $region8
  $region5: #{tpu_custom_call.1} parent=0 // loop_body
    %s16 = ssub.s32 %s11, 1
    %s17 = ssub.s32 %s11, 2
    %s18 = sadd.s32 %s11, 1
    %s19 = ssub.s32 %s11, %s18
    %p20 = scmp.eq.s32.totalorder %s19, 0
    %s22 = sadd.s32 %s21, 1
    %s23 = scalar_select %p20, %s21, %s22
    %p26 = pneg %p20
    %p27 = scmp.eq.s32.totalorder %s11, 1
    %p28 = por %p26, %p27
    %p29 = scmp.ne.s32.totalorder %s21, %s24
    %p30 = scmp.eq.s32.totalorder %s11, 0
    %p31 = por %p29, %p30
    %p32 = scmp.ne.s32.totalorder %s21, %s24
    %p33 = scmp.eq.s32.totalorder %s16, 1
    %p34 = por %p32, %p33
    %p35 = scmp.ne.s32.totalorder %s24, %s25
    %p36 = scmp.eq.s32.totalorder %s16, 0
    %p37 = por %p35, %p36
    %p38 = scmp.ne.s32.totalorder %s24, %s25
    %p39 = scmp.eq.s32.totalorder %s17, 1
    %p40 = por %p38, %p39
    %p42 = scmp.ne.s32.totalorder %s25, %s41
    %p43 = scmp.eq.s32.totalorder %s17, 0
    %p44 = por %p42, %p43
    %s46 = sadd.s32 %s45, 1
    %p49 = scmp.eq.s32.totalorder %s11, 1
    %p50 = scmp.ne.s32.totalorder %s45, %s47
    %p51 = scmp.eq.s32.totalorder %s11, 0
    %p52 = por %p50, %p51
    %p53 = scmp.ne.s32.totalorder %s45, %s47
    %p54 = scmp.eq.s32.totalorder %s16, 1
    %p55 = por %p53, %p54
    %p56 = scmp.ne.s32.totalorder %s47, %s48
    %p57 = scmp.eq.s32.totalorder %s16, 0
    %p58 = por %p56, %p57
    %p59 = scmp.ne.s32.totalorder %s47, %s48
    %p60 = scmp.eq.s32.totalorder %s17, 1
    %p61 = por %p59, %p60
    %p63 = scmp.ne.s32.totalorder %s48, %s62
    %p64 = scmp.eq.s32.totalorder %s17, 0
    %p65 = por %p63, %p64
    %s67 = sadd.s32 %s66, 1
    %p70 = scmp.eq.s32.totalorder %s11, 1
    %p71 = scmp.ne.s32.totalorder %s66, %s68
    %p72 = scmp.eq.s32.totalorder %s11, 0
    %p73 = por %p71, %p72
    %p74 = scmp.ne.s32.totalorder %s66, %s68
    %p75 = scmp.eq.s32.totalorder %s16, 1
    %p76 = por %p74, %p75
    %p77 = scmp.ne.s32.totalorder %s68, %s69
    %p78 = scmp.eq.s32.totalorder %s16, 0
    %p79 = por %p77, %p78
    %p80 = scmp.ne.s32.totalorder %s68, %s69
    %p81 = scmp.eq.s32.totalorder %s17, 1
    %p82 = por %p80, %p81
    %p84 = scmp.ne.s32.totalorder %s69, %s83
    %p85 = scmp.eq.s32.totalorder %s17, 0
    %p86 = por %p84, %p85
    %s88 = sadd.s32 %s87, 1
    %p91 = scmp.eq.s32.totalorder %s11, 1
    %p92 = scmp.ne.s32.totalorder %s87, %s89
    %p93 = scmp.eq.s32.totalorder %s11, 0
    %p94 = por %p92, %p93
    %p95 = scmp.ne.s32.totalorder %s87, %s89
    %p96 = scmp.eq.s32.totalorder %s16, 1
    %p97 = por %p95, %p96
    %p98 = scmp.ne.s32.totalorder %s89, %s90
    %p99 = scmp.eq.s32.totalorder %s16, 0
    %p100 = por %p98, %p99
    %p101 = scmp.ne.s32.totalorder %s89, %s90
    %p102 = scmp.eq.s32.totalorder %s17, 1
    %p103 = por %p101, %p102
    %p105 = scmp.ne.s32.totalorder %s90, %s104
    %p106 = scmp.eq.s32.totalorder %s17, 0
    %p107 = por %p105, %p106
    %s109 = sadd.s32 %s108, 1
    %p112 = scmp.eq.s32.totalorder %s11, 1
    %p113 = scmp.ne.s32.totalorder %s108, %s110
    %p114 = scmp.eq.s32.totalorder %s11, 0
    %p115 = por %p113, %p114
    %p116 = scmp.ne.s32.totalorder %s108, %s110
    %p117 = scmp.eq.s32.totalorder %s16, 1
    %p118 = por %p116, %p117
    %p119 = scmp.ne.s32.totalorder %s110, %s111
    %p120 = scmp.eq.s32.totalorder %s16, 0
    %p121 = por %p119, %p120
    %p122 = scmp.ne.s32.totalorder %s110, %s111
    %p123 = scmp.eq.s32.totalorder %s17, 1
    %p124 = por %p122, %p123
    %p126 = scmp.ne.s32.totalorder %s111, %s125
    %p127 = scmp.eq.s32.totalorder %s17, 0
    %p128 = por %p126, %p127
    %s129 = ssub.s32 %s11, %s18
    %p130 = scmp.eq.s32.totalorder %s129, 0
    %s132 = sadd.s32 %s131, 1
    %s133 = scalar_select %p130, %s131, %s132
    %p136 = pneg %p130
    %p137 = scmp.eq.s32.totalorder %s11, 1
    %p138 = por %p136, %p137
    %p139 = scmp.ne.s32.totalorder %s131, %s134
    %p140 = scmp.eq.s32.totalorder %s11, 0
    %p141 = por %p139, %p140
    %p142 = scmp.ne.s32.totalorder %s131, %s134
    %p143 = scmp.eq.s32.totalorder %s16, 1
    %p144 = por %p142, %p143
    %p145 = scmp.ne.s32.totalorder %s134, %s135
    %p146 = scmp.eq.s32.totalorder %s16, 0
    %p147 = por %p145, %p146
    %p148 = scmp.ne.s32.totalorder %s134, %s135
    %p149 = scmp.eq.s32.totalorder %s17, 1
    %p150 = por %p148, %p149
    %p152 = scmp.ne.s32.totalorder %s135, %s151
    %p153 = scmp.eq.s32.totalorder %s17, 0
    %p154 = por %p152, %p153
    %p155 = scmp.le.s32.totalorder 1, %s11
    %p156 = scmp.lt.s32.totalorder %s11, 3
    %p157 = pnand %p155, %p156
    %p158 = pneg %p157
    // Predicated region
    $region9: #{tpu_custom_call.1} parent=5 // pred_check
      _
    $region10: #{tpu_custom_call.1} parent=5 // pred_check_branch
      %160 = sbr.rel (%p157) target = $region12
    $region11: #{tpu_custom_call.1} parent=5 // pred_region
      %s161 = ssub.s32 %s11, 1
      // Predicated region
      $region13: #{tpu_custom_call.1} parent=11 // pred_check
        %p162 = pneg %p58
      $region14: #{tpu_custom_call.1} parent=11 // pred_check_branch
        %164 = sbr.rel (%p162) target = $region16
      $region15: #{tpu_custom_call.1} parent=11 // pred_region
        _
      $region16: #{tpu_custom_call.1} parent=11 // pred_fallthru
        _
      // Predicated region
      $region17: #{tpu_custom_call.1} parent=11 // pred_check
        %p165 = pneg %p79
      $region18: #{tpu_custom_call.1} parent=11 // pred_check_branch
        %167 = sbr.rel (%p165) target = $region20
      $region19: #{tpu_custom_call.1} parent=11 // pred_region
        _
      $region20: #{tpu_custom_call.1} parent=11 // pred_fallthru
        _
      // Predicated region
      $region21: #{tpu_custom_call.1} parent=11 // pred_check
        %p168 = pneg %p100
      $region22: #{tpu_custom_call.1} parent=11 // pred_check_branch
        %170 = sbr.rel (%p168) target = $region24
      $region23: #{tpu_custom_call.1} parent=11 // pred_region
        _
      $region24: #{tpu_custom_call.1} parent=11 // pred_fallthru
        _
      // Predicated region
      $region25: #{tpu_custom_call.1} parent=11 // pred_check
        %p171 = pneg %p121
      $region26: #{tpu_custom_call.1} parent=11 // pred_check_branch
        %173 = sbr.rel (%p171) target = $region28
      $region27: #{tpu_custom_call.1} parent=11 // pred_region
        _
      $region28: #{tpu_custom_call.1} parent=11 // pred_fallthru
        _
    $region12: #{tpu_custom_call.1} parent=5 // pred_fallthru
      _
    %p174 = scmp.lt.s32.totalorder %s11, 2
    // Predicated region
    $region29: #{tpu_custom_call.1} parent=5 // pred_check
      %p175 = pneg %p174
    $region30: #{tpu_custom_call.1} parent=5 // pred_check_branch
      %177 = sbr.rel (%p175) target = $region32
    $region31: #{tpu_custom_call.1} parent=5 // pred_region
      // Predicated region
      $region33: #{tpu_custom_call.1} parent=31 // pred_check
        %p178 = pneg %p31
      $region34: #{tpu_custom_call.1} parent=31 // pred_check_branch
        %180 = sbr.rel (%p178) target = $region36
      $region35: #{tpu_custom_call.1} parent=31 // pred_region
        %s181 = smul.u32 2, %s11
        %p182 = scmp.lt.s32.totalorder %s181, 3
        %s183 = scalar_select %p182, %s181, 3
        %s184 = smul.addr %s183, 8
        %s185 = scalar_lea.vmem %s0, %s184
        %s186 = smul.u32 2, %s11
      $region36: #{tpu_custom_call.1} parent=31 // pred_fallthru
        _
    $region32: #{tpu_custom_call.1} parent=5 // pred_fallthru
      _
    %p187 = scmp.le.s32.totalorder 1, %s11
    %p188 = scmp.lt.s32.totalorder %s11, 3
    %p189 = pnand %p187, %p188
    %p190 = pneg %p189
    // Predicated region
    $region37: #{tpu_custom_call.1} parent=5 // pred_check
      _
    $region38: #{tpu_custom_call.1} parent=5 // pred_check_branch
      %192 = sbr.rel (%p189) target = $region40
    $region39: #{tpu_custom_call.1} parent=5 // pred_region
      %s193 = ssub.s32 %s11, 1
      %s194 = smul.u32 2, %s16
      %p195 = scmp.lt.s32.totalorder %s194, 3
      %s196 = scalar_select %p195, %s194, 3
      %s197 = smul.addr %s196, 8
      %s198 = scalar_lea.vmem %s0, %s197
      %p199 = pneg %p37
      %p200 = pneg %p34
      %p201 = pneg %p58
      %p202 = pneg %p55
      %p203 = pneg %p79
      %p204 = pneg %p76
      %p205 = pneg %p100
      %p206 = pneg %p97
      %p207 = pneg %p121
      %p208 = pneg %p118
      %p209 = pneg %p147
      %p210 = pneg %p144
      %s211 = smul.u32 2, %s16
      %p212 = scmp.lt.s32.totalorder %s211, 3
      %s213 = scalar_select %p212, %s211, 3
      %s214 = smul.addr %s213, 8
      %s215 = scalar_lea.vmem %s5, %s214
      %s216 = smul.u32 2, %s16
      %p217 = scmp.lt.s32.totalorder %s216, 3
      %s218 = scalar_select %p217, %s216, 3
      %s219 = smul.addr %s218, 8
      %s220 = scalar_lea.vmem %s0, %s219
      %s221 = smul.u32 2, %s16
      %s222 = smul.u32 2, %s16
      %p223 = scmp.lt.s32.totalorder %s222, 3
      %s224 = scalar_select %p223, %s222, 3
      %s225 = smul.addr %s224, 8
      %s226 = scalar_lea.vmem %s5, %s225
      %s227 = smul.u32 2, %s16
      %v228 = vld [vmem:[%s220] sm:$0xff]
      %v229 = vld [vmem:[%s220 + $0x8] sm:$0xff]
      %v230 = vld [vmem:[%s1] sm:$0xff]
      %v231 = vld [vmem:[%s1 + $0x8] sm:$0xff]
      %v232 = vld [vmem:[%s1 + $0x10] sm:$0xff]
      %v233 = vld [vmem:[%s1 + $0x18] sm:$0xff]
      %v234 = vld [vmem:[%s2] sm:$0xff]
      %v235 = vld [vmem:[%s2 + $0x8] sm:$0xff]
      %v236 = vld [vmem:[%s2 + $0x10] sm:$0xff]
      %v237 = vld [vmem:[%s2 + $0x18] sm:$0xff]
      %239 = vset.pattern.permute.xlu0 0
      %240 = vperm.xlu0 %239, %v234
      %v241 = vpop.permute.xlu0 %240
      %244 = vset.pattern.permute.xlu0 0
      %245 = vperm.xlu0 %244, %v235
      %v246 = vpop.permute.xlu0 %245
      %249 = vset.pattern.permute.xlu0 0
      %250 = vperm.xlu0 %249, %v236
      %v251 = vpop.permute.xlu0 %250
      %254 = vset.pattern.permute.xlu0 0
      %255 = vperm.xlu0 %254, %v237
      %v256 = vpop.permute.xlu0 %255
      %vm258 = vcmask 130048
      %v260 = vsel %vm258, %v230, 0
      %v263 = vsel %vm258, %v231, 0
      %v266 = vsel %vm258, %v232, 0
      %v269 = vsel %vm258, %v233, 0
      %271 = vmatprep.subr.mxu0 0.0
      %272 = vmatpush1.msra.mxu0 %v228
      %273 = vmatprep.subr.mxu0 0.0
      %274 = vmatpush1.msra.mxu0 %v229
      %275 = vmatprep.subr.mxu0 0.0
      %276 = vmatpush1.msra.mxu0 0.0
      %277 = vmatprep.subr.mxu0 0.0
      %278 = vmatpush1.msra.mxu0 0.0
      %279 = vmatprep.subr.mxu0 0.0
      %280 = vmatpush1.msra.mxu0 0.0
      %281 = vmatprep.subr.mxu0 0.0
      %282 = vmatpush1.msra.mxu0 0.0
      %283 = vmatprep.subr.mxu0 0.0
      %284 = vmatpush1.msra.mxu0 0.0
      %285 = vmatprep.subr.mxu0 0.0
      %286 = vmatpush1.msra.mxu0 0.0
      %287 = vmatprep.subr.mxu0 0.0
      %288 = vmatpush1.msra.mxu0 0.0
      %289 = vmatprep.subr.mxu0 0.0
      %290 = vmatpush1.msra.mxu0 0.0
      %291 = vmatprep.subr.mxu0 0.0
      %292 = vmatpush1.msra.mxu0 0.0
      %293 = vmatprep.subr.mxu0 0.0
      %294 = vmatpush1.msra.mxu0 0.0
      %295 = vmatprep.subr.mxu0 0.0
      %296 = vmatpush1.msra.mxu0 0.0
      %297 = vmatprep.subr.mxu0 0.0
      %298 = vmatpush1.msra.mxu0 0.0
      %299 = vmatprep.subr.mxu0 0.0
      %300 = vmatpush1.msra.mxu0 0.0
      %301 = vmatprep.subr.mxu0 0.0
      %302 = vmatpush1.msra.mxu0 0.0
      %303 = vmatprep.subr.mxu0 0.0
      %304 = vmatpush1.msra.mxu0 0.0
      %305 = vmatprep.subr.mxu0 0.0
      %306 = vmatpush1.msra.mxu0 0.0
      %307 = vmatprep.subr.mxu0 0.0
      %308 = vmatpush1.msra.mxu0 0.0
      %309 = vmatprep.subr.mxu0 0.0
      %310 = vmatpush1.msra.mxu0 0.0
      %311 = vmatprep.subr.mxu0 0.0
      %312 = vmatpush1.msra.mxu0 0.0
      %313 = vmatprep.subr.mxu0 0.0
      %314 = vmatpush1.msra.mxu0 0.0
      %315 = vmatprep.subr.mxu0 0.0
      %316 = vmatpush1.msra.mxu0 0.0
      %317 = vmatprep.subr.mxu0 0.0
      %318 = vmatpush1.msra.mxu0 0.0
      %319 = vmatprep.subr.mxu0 0.0
      %320 = vmatpush1.msra.mxu0 0.0
      %321 = vmatprep.subr.mxu0 0.0
      %322 = vmatpush1.msra.mxu0 0.0
      %323 = vmatprep.subr.mxu0 0.0
      %324 = vmatpush1.msra.mxu0 0.0
      %325 = vmatprep.subr.mxu0 0.0
      %326 = vmatpush1.msra.mxu0 0.0
      %327 = vmatprep.subr.mxu0 0.0
      %328 = vmatpush1.msra.mxu0 0.0
      %329 = vmatprep.subr.mxu0 0.0
      %330 = vmatpush1.msra.mxu0 0.0
      %331 = vmatprep.subr.mxu0 0.0
      %332 = vmatpush1.msra.mxu0 0.0
      %333 = vmatprep.subr.mxu0 0.0
      %334 = vmatpush1.msra.mxu0 0.0
      %335 = vmatprep.mubr.f32.mxu0 0.0
      %336 = vmatmul.mubr.f32.gmra.mrb[0].mxu0 %v260
      %v337 = vpop.f32.mrb[0].mxu0
      %v338 = vadd.f32 %v241, %v337
      %v339 = vpop.f32.mrb[0].mxu0
      %340 = vmatprep.mubr.f32.mxu0 0.0
      %341 = vmatmul.mubr.f32.gmra.mrb[0].mxu0 %v263
      %v342 = vpop.f32.mrb[0].mxu0
      %v343 = vadd.f32 %v246, %v342
      %v344 = vpop.f32.mrb[0].mxu0
      %345 = vmatprep.mubr.f32.mxu0 0.0
      %346 = vmatmul.mubr.f32.gmra.mrb[0].mxu0 %v266
      %v347 = vpop.f32.mrb[0].mxu0
      %v348 = vadd.f32 %v251, %v347
      %v349 = vpop.f32.mrb[0].mxu0
      %350 = vmatprep.mubr.f32.mxu0 0.0
      %351 = vmatmul.mubr.f32.gmra.mrb[0].mxu0 %v269
      %v352 = vpop.f32.mrb[0].mxu0
      %v353 = vadd.f32 %v256, %v352
      %v354 = vpop.f32.mrb[0].mxu0
      %355 = vdwg.mxu0
      %vm356 = vcmask 261120
      %v357 = vsel %vm356, %v338, -inf
      %358 = vmax.xlane.f32.xlu0 %v357
      %v359 = vpop.xlane.xlu0 %358
      %v360 = vsel %vm356, %v343, -inf
      %361 = vmax.xlane.f32.xlu0 %v360
      %v362 = vpop.xlane.xlu0 %361
      %v363 = vsel %vm356, %v348, -inf
      %364 = vmax.xlane.f32.xlu0 %v363
      %v365 = vpop.xlane.xlu0 %364
      %v366 = vsel %vm356, %v353, -inf
      %367 = vmax.xlane.f32.xlu0 %v366
      %v368 = vpop.xlane.xlu0 %367
      %v369 = vsub.f32 %v338, %v359
      %v370 = vsub.f32 %v343, %v362
      %v371 = vsub.f32 %v348, %v365
      %v372 = vsub.f32 %v353, %v368
      %v373 = vmul.f32 %v369, 1.442695
      %v374 = vpow.pop %v373
      %v375 = vmul.f32 %v370, 1.442695
      %v376 = vpow.pop %v375
      %v377 = vmul.f32 %v371, 1.442695
      %v378 = vpow.pop %v377
      %v379 = vmul.f32 %v372, 1.442695
      %v380 = vpow.pop %v379
      %v381 = vsel %vm356, %v374, 0.0
      %382 = vadd.xlane.f32.xlu0 %v381
      %v383 = vpop.xlane.xlu0 %382
      %v384 = vsel %vm356, %v376, 0.0
      %385 = vadd.xlane.f32.xlu0 %v384
      %v386 = vpop.xlane.xlu0 %385
      %v387 = vsel %vm356, %v378, 0.0
      %388 = vadd.xlane.f32.xlu0 %v387
      %v389 = vpop.xlane.xlu0 %388
      %v390 = vsel %vm356, %v380, 0.0
      %391 = vadd.xlane.f32.xlu0 %v390
      %v392 = vpop.xlane.xlu0 %391
      %v393 = vrcp.pop %v383
      %v394 = vrcp.pop %v386
      %v395 = vrcp.pop %v389
      %v396 = vrcp.pop %v392
      %v397 = vmul.f32 %v374, %v393
      %v398 = vmul.f32 %v376, %v394
      %v399 = vmul.f32 %v378, %v395
      %v400 = vmul.f32 %v380, %v396
      %v402 = vsel %vm356, %v228, 0
      %v405 = vsel %vm356, %v229, 0
      %407 = vmatprep.subr.mxu0 0.0
      %408 = vmatpush1.msra.mxu0 %v397
      %409 = vmatprep.subr.mxu0 0.0
      %410 = vmatpush1.msra.mxu0 %v398
      %411 = vmatprep.subr.mxu0 0.0
      %412 = vmatpush1.msra.mxu0 %v399
      %413 = vmatprep.subr.mxu0 0.0
      %414 = vmatpush1.msra.mxu0 %v400
      %415 = vmatprep.subr.mxu0 0.0
      %416 = vmatpush1.msra.mxu0 0.0
      %417 = vmatprep.subr.mxu0 0.0
      %418 = vmatpush1.msra.mxu0 0.0
      %419 = vmatprep.subr.mxu0 0.0
      %420 = vmatpush1.msra.mxu0 0.0
      %421 = vmatprep.subr.mxu0 0.0
      %422 = vmatpush1.msra.mxu0 0.0
      %423 = vmatprep.subr.mxu0 0.0
      %424 = vmatpush1.msra.mxu0 0.0
      %425 = vmatprep.subr.mxu0 0.0
      %426 = vmatpush1.msra.mxu0 0.0
      %427 = vmatprep.subr.mxu0 0.0
      %428 = vmatpush1.msra.mxu0 0.0
      %429 = vmatprep.subr.mxu0 0.0
      %430 = vmatpush1.msra.mxu0 0.0
      %431 = vmatprep.subr.mxu0 0.0
      %432 = vmatpush1.msra.mxu0 0.0
      %433 = vmatprep.subr.mxu0 0.0
      %434 = vmatpush1.msra.mxu0 0.0
      %435 = vmatprep.subr.mxu0 0.0
      %436 = vmatpush1.msra.mxu0 0.0
      %437 = vmatprep.subr.mxu0 0.0
      %438 = vmatpush1.msra.mxu0 0.0
      %439 = vmatprep.subr.mxu0 0.0
      %440 = vmatpush1.msra.mxu0 0.0
      %441 = vmatprep.subr.mxu0 0.0
      %442 = vmatpush1.msra.mxu0 0.0
      %443 = vmatprep.subr.mxu0 0.0
      %444 = vmatpush1.msra.mxu0 0.0
      %445 = vmatprep.subr.mxu0 0.0
      %446 = vmatpush1.msra.mxu0 0.0
      %447 = vmatprep.subr.mxu0 0.0
      %448 = vmatpush1.msra.mxu0 0.0
      %449 = vmatprep.subr.mxu0 0.0
      %450 = vmatpush1.msra.mxu0 0.0
      %451 = vmatprep.subr.mxu0 0.0
      %452 = vmatpush1.msra.mxu0 0.0
      %453 = vmatprep.subr.mxu0 0.0
      %454 = vmatpush1.msra.mxu0 0.0
      %455 = vmatprep.subr.mxu0 0.0
      %456 = vmatpush1.msra.mxu0 0.0
      %457 = vmatprep.subr.mxu0 0.0
      %458 = vmatpush1.msra.mxu0 0.0
      %459 = vmatprep.subr.mxu0 0.0
      %460 = vmatpush1.msra.mxu0 0.0
      %461 = vmatprep.subr.mxu0 0.0
      %462 = vmatpush1.msra.mxu0 0.0
      %463 = vmatprep.subr.mxu0 0.0
      %464 = vmatpush1.msra.mxu0 0.0
      %465 = vmatprep.subr.mxu0 0.0
      %466 = vmatpush1.msra.mxu0 0.0
      %467 = vmatprep.subr.mxu0 0.0
      %468 = vmatpush1.msra.mxu0 0.0
      %469 = vmatprep.subr.mxu0 0.0
      %470 = vmatpush1.msra.mxu0 0.0
      %471 = vmatprep.mubr.f32.mxu0 0.0
      %472 = vmatmul.mubr.f32.gmra.mrb[0].mxu0 %v402
      %v473 = vpop.f32.mrb[0].mxu0
      %v474 = vadd.f32 0.0, %v473
      %v475 = vpop.f32.mrb[0].mxu0
      %476 = vmatprep.mubr.f32.mxu0 0.0
      %477 = vmatmul.mubr.f32.gmra.mrb[0].mxu0 %v405
      %v478 = vpop.f32.mrb[0].mxu0
      %v479 = vadd.f32 0.0, %v478
      %v480 = vpop.f32.mrb[0].mxu0
      %481 = vdwg.mxu0
      %v482 = vmax.f32 %v474, 0.0
      %v483 = vmax.f32 %v479, 0.0
      %v484 = vld [vmem:[%s3] sm:$0xff]
      %v485 = vld [vmem:[%s3 + $0x8] sm:$0xff]
      %v486 = vld [vmem:[%s3 + $0x10] sm:$0xff]
      %v487 = vld [vmem:[%s3 + $0x18] sm:$0xff]
      %v488 = vld [vmem:[%s4] sm:$0x1]
      %v490 = vlaneseq
      %v491 = vshrl.u32 %v490, 7
      %v492 = vsub.s32 0, %v491
      %v493 = vrot.slane %v488, %v492
      %v496 = vsel %vm356, %v482, 0
      %v499 = vsel %vm356, %v483, 0
      %501 = vmatprep.subr.mxu0 0.0
      %502 = vmatpush1.msra.mxu0 %v484
      %503 = vmatprep.subr.mxu0 0.0
      %504 = vmatpush1.msra.mxu0 %v485
      %505 = vmatprep.subr.mxu0 0.0
      %506 = vmatpush1.msra.mxu0 %v486
      %507 = vmatprep.subr.mxu0 0.0
      %508 = vmatpush1.msra.mxu0 %v487
      %509 = vmatprep.subr.mxu0 0.0
      %510 = vmatpush1.msra.mxu0 0.0
      %511 = vmatprep.subr.mxu0 0.0
      %512 = vmatpush1.msra.mxu0 0.0
      %513 = vmatprep.subr.mxu0 0.0
      %514 = vmatpush1.msra.mxu0 0.0
      %515 = vmatprep.subr.mxu0 0.0
      %516 = vmatpush1.msra.mxu0 0.0
      %517 = vmatprep.subr.mxu0 0.0
      %518 = vmatpush1.msra.mxu0 0.0
      %519 = vmatprep.subr.mxu0 0.0
      %520 = vmatpush1.msra.mxu0 0.0
      %521 = vmatprep.subr.mxu0 0.0
      %522 = vmatpush1.msra.mxu0 0.0
      %523 = vmatprep.subr.mxu0 0.0
      %524 = vmatpush1.msra.mxu0 0.0
      %525 = vmatprep.subr.mxu0 0.0
      %526 = vmatpush1.msra.mxu0 0.0
      %527 = vmatprep.subr.mxu0 0.0
      %528 = vmatpush1.msra.mxu0 0.0
      %529 = vmatprep.subr.mxu0 0.0
      %530 = vmatpush1.msra.mxu0 0.0
      %531 = vmatprep.subr.mxu0 0.0
      %532 = vmatpush1.msra.mxu0 0.0
      %533 = vmatprep.subr.mxu0 0.0
      %534 = vmatpush1.msra.mxu0 0.0
      %535 = vmatprep.subr.mxu0 0.0
      %536 = vmatpush1.msra.mxu0 0.0
      %537 = vmatprep.subr.mxu0 0.0
      %538 = vmatpush1.msra.mxu0 0.0
      %539 = vmatprep.subr.mxu0 0.0
      %540 = vmatpush1.msra.mxu0 0.0
      %541 = vmatprep.subr.mxu0 0.0
      %542 = vmatpush1.msra.mxu0 0.0
      %543 = vmatprep.subr.mxu0 0.0
      %544 = vmatpush1.msra.mxu0 0.0
      %545 = vmatprep.subr.mxu0 0.0
      %546 = vmatpush1.msra.mxu0 0.0
      %547 = vmatprep.subr.mxu0 0.0
      %548 = vmatpush1.msra.mxu0 0.0
      %549 = vmatprep.subr.mxu0 0.0
      %550 = vmatpush1.msra.mxu0 0.0
      %551 = vmatprep.subr.mxu0 0.0
      %552 = vmatpush1.msra.mxu0 0.0
      %553 = vmatprep.subr.mxu0 0.0
      %554 = vmatpush1.msra.mxu0 0.0
      %555 = vmatprep.subr.mxu0 0.0
      %556 = vmatpush1.msra.mxu0 0.0
      %557 = vmatprep.subr.mxu0 0.0
      %558 = vmatpush1.msra.mxu0 0.0
      %559 = vmatprep.subr.mxu0 0.0
      %560 = vmatpush1.msra.mxu0 0.0
      %561 = vmatprep.subr.mxu0 0.0
      %562 = vmatpush1.msra.mxu0 0.0
      %563 = vmatprep.subr.mxu0 0.0
      %564 = vmatpush1.msra.mxu0 0.0
      %565 = vmatprep.mubr.f32.mxu0 0.0
      %566 = vmatmul.mubr.f32.gmra.mrb[0].mxu0 %v496
      %v567 = vpop.f32.mrb[0].mxu0
      %v568 = vadd.f32 %v493, %v567
      %v569 = vpop.f32.mrb[0].mxu0
      %570 = vmatprep.mubr.f32.mxu0 0.0
      %571 = vmatmul.mubr.f32.gmra.mrb[0].mxu0 %v499
      %v572 = vpop.f32.mrb[0].mxu0
      %v573 = vadd.f32 %v493, %v572
      %v574 = vpop.f32.mrb[0].mxu0
      %575 = vdwg.mxu0
      %vm576 = vcmask 64512
      %577 = vst.msk [vmem:[%s226] sm:$0xff] %vm576, %v568
      %578 = vst.msk [vmem:[%s226 + $0x8] sm:$0xff] %vm576, %v573
      %s579 = smul.u32 2, %s16
      %p580 = scmp.lt.s32.totalorder %s579, 3
      %s581 = scalar_select %p580, %s579, 3
      %s582 = smul.addr %s581, 8
      %s583 = scalar_lea.vmem %s5, %s582
      // Predicated region
      $region41: #{tpu_custom_call.1} parent=39 // pred_check
        %p584 = pneg %p144
      $region42: #{tpu_custom_call.1} parent=39 // pred_check_branch
        %586 = sbr.rel (%p584) target = $region44
      $region43: #{tpu_custom_call.1} parent=39 // pred_region
        %s587 = smul.u32 2, %s16
      $region44: #{tpu_custom_call.1} parent=39 // pred_fallthru
        _
    $region40: #{tpu_custom_call.1} parent=5 // pred_fallthru
      _
    %p588 = scmp.le.s32.totalorder 2, %s11
    // Predicated region
    $region45: #{tpu_custom_call.1} parent=5 // pred_check
      %p589 = pneg %p588
    $region46: #{tpu_custom_call.1} parent=5 // pred_check_branch
      %591 = sbr.rel (%p589) target = $region48
    $region47: #{tpu_custom_call.1} parent=5 // pred_region
      %s592 = ssub.s32 %s11, 2
      // Predicated region
      $region49: #{tpu_custom_call.1} parent=47 // pred_check
        %p593 = pneg %p150
      $region50: #{tpu_custom_call.1} parent=47 // pred_check_branch
        %595 = sbr.rel (%p593) target = $region52
      $region51: #{tpu_custom_call.1} parent=47 // pred_region
        %s596 = smul.u32 2, %s17
        %p597 = scmp.lt.s32.totalorder %s596, 3
        %s598 = scalar_select %p597, %s596, 3
        %s599 = smul.addr %s598, 8
        %s600 = scalar_lea.vmem %s5, %s599
      $region52: #{tpu_custom_call.1} parent=47 // pred_fallthru
        _
    $region48: #{tpu_custom_call.1} parent=5 // pred_fallthru
      _
  $region6: #{tpu_custom_call.1} parent=0 // loop_footer
    %s15 = sadd.s32 1, %s11
  $region7: #{tpu_custom_call.1} parent=0 // loop_footer_branch
    %10 = sbr.rel target = $region3
  $region8: #{tpu_custom_call.1} parent=0 // loop_exit
    _

</llo_original>
